<compile_context>
chip_gen: v5e
topology: v5e:2x2
jax: 0.10.0
libtpu: 0.0.40
codegen_flags: <defaults>
</compile_context>

<pallas_src>
import functools

import jax
import jax.numpy as jnp
from jax import lax
from jax.experimental import pallas as pl
from jax.experimental.pallas import tpu as pltpu


# -----------------------------------------------------------------------------
# Tiling helper: largest tile <= target that divides `dim`, preferring
# multiples of `align`; falls back to the full dimension (always valid).
# -----------------------------------------------------------------------------
def _pick_tile(dim, target, align):
    if dim <= target:
        return dim
    t = (target // align) * align
    while t >= align:
        if dim % t == 0:
            return t
        t -= align
    return dim


# -----------------------------------------------------------------------------
# One-time parameter relayout (done at init, outside the hot path).
# PyTorch Linear stores W as (out_features, in_features); y = x @ W^T.
# W^T already has head-contiguous output columns (head h = cols h*hd..(h+1)*hd),
# so the projection matmuls can run at full width and the head split happens
# only at the store.  The softmax scale is folded into Wq here.
#   wq_t  : (E, E)    = Wq^T * hd^-0.5
#   wkv_t : (E, 2E)   = Wkv^T   (cols [0,E)=K heads, [E,2E)=V heads)
#   wo_r  : (H, hd, E) slab h = Wo^T[h*hd:(h+1)*hd, :]
# -----------------------------------------------------------------------------
def prepare_params(params, num_heads, compute_dtype=jnp.float32):
    E = params["wq"].shape[0]
    hd = E // num_heads
    scale = float(hd) ** -0.5
    wq_t = params["wq"].T * scale
    wkv_t = params["wkv"].T
    wo_r = params["wo"].T.reshape(num_heads, hd, E)
    return {
        "wq_t": wq_t.astype(compute_dtype),
        "wkv_t": wkv_t.astype(compute_dtype),
        "wo_r": wo_r.astype(compute_dtype),
        "bo": params["bo"].reshape(1, E).astype(jnp.float32),
        "num_heads": num_heads,
        "head_dim": hd,
    }


# -----------------------------------------------------------------------------
# Kernel 1: full-width projection with head-major split store.
#   x: (M, K), w_t: (K, E_out)  ->  y: (E_out/hd, M, hd)
# grid = (M//tm, K//tk); K axis is the reduction (f32 (tm, E_out) accumulator).
# x is streamed exactly once; the matmul N dim is E_out (lane-dense, full MXU
# width); the per-head slicing happens only in the last-K-step epilogue.
# q/kv projections are bias-free (module uses bias=False), so no bias input.
# -----------------------------------------------------------------------------
def _proj_kernel(x_ref, w_ref, o_ref, acc_ref, *, compute_dtype, num_slabs, hd):
    k = pl.program_id(1)

    @pl.when(k == 0)
    def _():
        acc_ref[...] = jnp.zeros_like(acc_ref)

    acc_ref[...] += jnp.dot(
        x_ref[...].astype(compute_dtype),
        w_ref[...].astype(compute_dtype),
        preferred_element_type=jnp.float32,
    )

    @pl.when(k == pl.num_programs(1) - 1)
    def _():
        acc = acc_ref[...]
        for h in range(num_slabs):            # static unrolled head split
            o_ref[h] = acc[:, h * hd:(h + 1) * hd].astype(o_ref.dtype)


def head_projection(x, w_t, hd, *, compute_dtype, out_dtype,
                    tm_target=512, tk_target=512):
    M, K = x.shape
    K2, E_out = w_t.shape
    assert K == K2 and E_out % hd == 0
    num_slabs = E_out // hd
    tm = _pick_tile(M, tm_target, 8)
    tk = _pick_tile(K, tk_target, 128)
    grid = (M // tm, K // tk)
    kern = functools.partial(_proj_kernel, compute_dtype=compute_dtype,
                             num_slabs=num_slabs, hd=hd)
    return pl.pallas_call(
        kern,
        out_shape=jax.ShapeDtypeStruct((num_slabs, M, hd), out_dtype),
        grid=grid,
        in_specs=[
            pl.BlockSpec((tm, tk), lambda i, k: (i, k)),
            pl.BlockSpec((tk, E_out), lambda i, k: (k, 0)),
        ],
        out_specs=pl.BlockSpec((num_slabs, tm, hd), lambda i, k: (0, i, 0)),
        scratch_shapes=[pltpu.VMEM((tm, E_out), jnp.float32)],
        compiler_params=pltpu.CompilerParams(
            dimension_semantics=("parallel", "arbitrary")),
    )(x, w_t)


# -----------------------------------------------------------------------------
# Kernel 2: flash attention (online softmax) FUSED with the output projection
# and bias.  grid = (B*nq, H, nkv); the (tq, E) output block is resident
# across both the head axis (true reduction via out_acc) and the kv axis.
#   q: (H, B*T_q, hd); kv: (2H, B*T_kv, hd): k = kv[h], v = kv[H + h]
#   wo: (H, hd, E); bias: (1, E)  ->  out: (B*T_q, E)
# -----------------------------------------------------------------------------
def _flash_outproj_kernel(q_ref, k_ref, v_ref, wo_ref, b_ref, out_ref,
                          m_sc, l_sc, attn_acc, out_acc,
                          *, compute_dtype, exp_in_bf16, approx_recip):
    h = pl.program_id(1)
    j = pl.program_id(2)
    n_h = pl.num_programs(1)
    n_kv = pl.num_programs(2)

    @pl.when(j == 0)
    def _():
        m_sc[...] = jnp.full_like(m_sc, -jnp.inf)
        l_sc[...] = jnp.zeros_like(l_sc)
        attn_acc[...] = jnp.zeros_like(attn_acc)

    @pl.when(jnp.logical_and(h == 0, j == 0))
    def _():
        out_acc[...] = jnp.zeros_like(out_acc)

    q = q_ref[0].astype(compute_dtype)   # (tq, hd)  (scale folded into Wq)
    k = k_ref[0].astype(compute_dtype)   # (tkv, hd)
    v = v_ref[0].astype(compute_dtype)   # (tkv, hd)

    # scores: contract last dims of q and k -> no K-tile transpose on the XLU.
    s = lax.dot_general(q, k, (((1,), (1,)), ((), ())),
                        preferred_element_type=jnp.float32)       # (tq, tkv)

    # TODO(synk): q/kv token masks and is_causal masking (module defaults are
    # None / False) are not wired in.
    m_prev = m_sc[...]
    m_new = jnp.maximum(m_prev, s.max(axis=-1, keepdims=True))
    alpha = jnp.exp(m_prev - m_new)
    if exp_in_bf16:
        p = jnp.exp((s - m_new).astype(jnp.bfloat16))   # EUP in bf16
    else:
        p = jnp.exp(s - m_new)
    l_sc[...] = alpha * l_sc[...] + jnp.sum(
        p.astype(jnp.float32), axis=-1, keepdims=True)
    attn_acc[...] = alpha * attn_acc[...] + jnp.dot(
        p.astype(compute_dtype), v, preferred_element_type=jnp.float32)
    m_sc[...] = m_new

    # Last kv step for this head: normalize and fold into the output
    # projection accumulator (head-concat is the contraction over heads).
    @pl.when(j == n_kv - 1)
    def _():
        if approx_recip:
            o_h = attn_acc[...] * pl.reciprocal(l_sc[...], approx=True)
        else:
            o_h = attn_acc[...] / l_sc[...]
        out_acc[...] += jnp.dot(o_h.astype(compute_dtype), wo_ref[0],
                                preferred_element_type=jnp.float32)

    @pl.when(jnp.logical_and(h == n_h - 1, j == n_kv - 1))
    def _():
        out_ref[...] = (out_acc[...]
                        + b_ref[...].astype(jnp.float32)).astype(out_ref.dtype)


def flash_attention_outproj(q_heads, kv_heads, wo_r, bias, batch, t_q, t_kv,
                            *, compute_dtype, out_dtype,
                            tq_target=256, tkv_target=256):
    H, Mq, hd = q_heads.shape
    E = wo_r.shape[-1]
    assert kv_heads.shape[0] == 2 * H
    assert Mq == batch * t_q and kv_heads.shape[1] == batch * t_kv
    tq = _pick_tile(t_q, tq_target, 8)
    tkv = _pick_tile(t_kv, tkv_target, 8)
    nq, nkv = t_q // tq, t_kv // tkv
    # Leading axis collapses (batch, q-tile) for balanced megacore sharding.
    grid = (batch * nq, H, nkv)
    is_bf16 = jnp.dtype(compute_dtype) == jnp.dtype(jnp.bfloat16)
    kern = functools.partial(
        _flash_outproj_kernel, compute_dtype=compute_dtype,
        exp_in_bf16=is_bf16, approx_recip=is_bf16)
    return pl.pallas_call(
        kern,
        out_shape=jax.ShapeDtypeStruct((Mq, E), out_dtype),
        grid=grid,
        in_specs=[
            pl.BlockSpec((1, tq, hd), lambda bi, h, j: (h, bi, 0)),
            pl.BlockSpec((1, tkv, hd),
                         lambda bi, h, j: (h, (bi // nq) * nkv + j, 0)),
            pl.BlockSpec((1, tkv, hd),
                         lambda bi, h, j: (H + h, (bi // nq) * nkv + j, 0)),
            pl.BlockSpec((1, hd, E), lambda bi, h, j: (h, 0, 0)),
            pl.BlockSpec((1, E), lambda bi, h, j: (0, 0)),
        ],
        out_specs=pl.BlockSpec((tq, E), lambda bi, h, j: (bi, 0)),
        scratch_shapes=[
            pltpu.VMEM((tq, 1), jnp.float32),    # running max
            pltpu.VMEM((tq, 1), jnp.float32),    # running sum
            pltpu.VMEM((tq, hd), jnp.float32),   # per-head attention acc
            pltpu.VMEM((tq, E), jnp.float32),    # fused output-proj acc
        ],
        compiler_params=pltpu.CompilerParams(
            dimension_semantics=("parallel", "arbitrary", "arbitrary")),
    )(q_heads, kv_heads, kv_heads, wo_r, bias)


# -----------------------------------------------------------------------------
# Full module forward (eval mode: dropout = identity, is_causal=False,
# q_token_attn_mask=None, kv_token_attn_mask=None).
# -----------------------------------------------------------------------------
def mha_forward(prepared, query, keyvalue, *, compute_dtype=jnp.float32):
    B, T_q, E = query.shape
    _, T_kv, _ = keyvalue.shape
    hd = prepared["head_dim"]
    out_dtype = query.dtype

    xq = query.reshape(B * T_q, E)          # free metadata reshape
    xkv = keyvalue.reshape(B * T_kv, E)     # free metadata reshape

    # Full-width projections (x streamed once) with head-major split stores.
    q_heads = head_projection(xq, prepared["wq_t"], hd,
                              compute_dtype=compute_dtype,
                              out_dtype=compute_dtype)     # (H, B*T_q, hd)
    kv_heads = head_projection(xkv, prepared["wkv_t"], hd,
                               compute_dtype=compute_dtype,
                               out_dtype=compute_dtype)    # (2H, B*T_kv, hd)

    # Flash attention fused with the output projection + bias (no o_heads
    # HBM round trip); KV split is pure BlockSpec indexing.
    out = flash_attention_outproj(q_heads, kv_heads, prepared["wo_r"],
                                  prepared["bo"], B, T_q, T_kv,
                                  compute_dtype=compute_dtype,
                                  out_dtype=out_dtype)     # (B*T_q, E)

    # TODO(synk): training-mode dropout not wired in (identity in eval mode).
    return out.reshape(B, T_q, E)


# -----------------------------------------------------------------------------
# Pure-JAX reference for sanity checking
# -----------------------------------------------------------------------------
def mha_reference(params, query, keyvalue, num_heads):
    B, T_q, E = query.shape
    _, T_kv, _ = keyvalue.shape
    hd = E // num_heads
    q = query @ params["wq"].T
    kv = keyvalue @ params["wkv"].T
    k, v = kv[..., :E], kv[..., E:]
    q = q.reshape(B, T_q, num_heads, hd).transpose(0, 2, 1, 3)
    k = k.reshape(B, T_kv, num_heads, hd).transpose(0, 2, 1, 3)
    v = v.reshape(B, T_kv, num_heads, hd).transpose(0, 2, 1, 3)
    s = jnp.einsum("bhqd,bhkd->bhqk", q, k) * (hd ** -0.5)
    p = jax.nn.softmax(s, axis=-1)
    o = jnp.einsum("bhqk,bhkd->bhqd", p, v)
    o = o.transpose(0, 2, 1, 3).reshape(B, T_q, E)
    return o @ params["wo"].T + params["bo"]


if __name__ == "__main__":
    # Small shapes consistent with the module
    B, T_q, T_kv, E, H = 2, 8, 8, 32, 4

    key = jax.random.PRNGKey(0)
    k1, k2, k3, k4, k5, k6 = jax.random.split(key, 6)

    # PyTorch Linear weight layout: (out_features, in_features).
    # q / kv projections are bias-free (module bias=False); only the output
    # linear has a bias.
    params = {
        "wq":  jax.random.normal(k1, (E, E), jnp.float32) * 0.05,
        "wkv": jax.random.normal(k2, (2 * E, E), jnp.float32) * 0.05,
        "wo":  jax.random.normal(k3, (E, E), jnp.float32) * 0.05,
        "bo":  jax.random.normal(k4, (E,), jnp.float32) * 0.05,
    }

    query = jax.random.normal(k5, (B, T_q, E), jnp.float32)
    keyvalue = jax.random.normal(k6, (B, T_kv, E), jnp.float32)

    ref = mha_reference(params, query, keyvalue, H)

    # f32 path: tight numerical check.
    prep_f32 = prepare_params(params, H, jnp.float32)
    out_f32 = mha_forward(prep_f32, query, keyvalue, compute_dtype=jnp.float32)
    out_f32 = jax.block_until_ready(out_f32)
    assert out_f32.shape == (B, T_q, E)
    assert jnp.allclose(out_f32, ref, atol=2e-3, rtol=2e-3), \
        "f32 mismatch vs reference"

    # bf16-MXU path (f32 accumulation, bf16 exp, f32 running stats): loose check.
    prep_bf16 = prepare_params(params, H, jnp.bfloat16)
    out_bf16 = mha_forward(prep_bf16, query, keyvalue, compute_dtype=jnp.bfloat16)
    out_bf16 = jax.block_until_ready(out_bf16)
    assert out_bf16.shape == (B, T_q, E)
    assert jnp.allclose(out_bf16, ref, atol=5e-2, rtol=5e-2), \
        "bf16 mismatch vs reference"

    print("KERNEL_OK")
</pallas_src>

<mosaic_0001>
module attributes {stable_mosaic.version = 11 : i64} {
  func.func @_proj_kernel(%arg0: i32, %arg1: i32, %arg2: memref<16x32xf32, #tpu.memory_space<vmem>>, %arg3: memref<32x32xf32, #tpu.memory_space<vmem>>, %arg4: memref<4x16x8xf32, #tpu.memory_space<vmem>>, %arg5: memref<16x32xf32, #tpu.memory_space<vmem>>) attributes {dimension_semantics = [#tpu.dimension_semantics<parallel>, #tpu.dimension_semantics<arbitrary>], iteration_bounds = array<i64: 1, 1>, scalar_prefetch = 0 : i64, scratch_operands = 1 : i64, tpu.core_type = #tpu.core_type<tc>, window_params = [{transform_indices = @transform_0, window_bounds = array<i64: 16, 32>}, {transform_indices = @transform_1, window_bounds = array<i64: 32, 32>}, {transform_indices = @transform_2, window_bounds = array<i64: 4, 16, 8>}]} {
    %c0_i32 = arith.constant 0 : i32
    %0 = arith.cmpi eq, %arg1, %c0_i32 : i32
    %1 = arith.extui %0 : i1 to i32
    %c0_i32_0 = arith.constant 0 : i32
    %2 = arith.cmpi ne, %1, %c0_i32_0 : i32
    scf.if %2 {
      %cst_10 = arith.constant 0.000000e+00 : f32
      %12 = vector.broadcast %cst_10 : f32 to vector<16x32xf32>
      %c0_11 = arith.constant 0 : index
      %c0_12 = arith.constant 0 : index
      %13 = vector.load %arg5[%c0_11, %c0_12] : memref<16x32xf32, #tpu.memory_space<vmem>>, vector<16x32xf32>
      tpu.vector_store %arg5[%c0_11, %c0_12], %12 {strides = array<i32>} : memref<16x32xf32, #tpu.memory_space<vmem>>, vector<16x32xf32>,
    } else {
    }
    %c0 = arith.constant 0 : index
    %c0_1 = arith.constant 0 : index
    %3 = vector.load %arg5[%c0, %c0_1] : memref<16x32xf32, #tpu.memory_space<vmem>>, vector<16x32xf32>
    %c0_2 = arith.constant 0 : index
    %c0_3 = arith.constant 0 : index
    %4 = vector.load %arg2[%c0_2, %c0_3] : memref<16x32xf32, #tpu.memory_space<vmem>>, vector<16x32xf32>
    %c0_4 = arith.constant 0 : index
    %c0_5 = arith.constant 0 : index
    %5 = vector.load %arg3[%c0_4, %c0_5] : memref<32x32xf32, #tpu.memory_space<vmem>>, vector<32x32xf32>
    %cst = arith.constant dense<0.000000e+00> : vector<16x32xf32>
    %6 = tpu.matmul %4, %5, %cst {dimension_numbers = #tpu.dot_dimension_numbers<[1], [0], [0], [1], [0, 0, 1, 1], [], []>} : vector<16x32xf32>, vector<32x32xf32>, vector<16x32xf32> -> vector<16x32xf32>
    %7 = arith.addf %3, %6 : vector<16x32xf32>
    %c0_6 = arith.constant 0 : index
    %c0_7 = arith.constant 0 : index
    %8 = vector.load %arg5[%c0_6, %c0_7] : memref<16x32xf32, #tpu.memory_space<vmem>>, vector<16x32xf32>
    tpu.vector_store %arg5[%c0_6, %c0_7], %7 {strides = array<i32>} : memref<16x32xf32, #tpu.memory_space<vmem>>, vector<16x32xf32>,
    %c0_i32_8 = arith.constant 0 : i32
    %9 = arith.cmpi eq, %arg1, %c0_i32_8 : i32
    %10 = arith.extui %9 : i1 to i32
    %c0_i32_9 = arith.constant 0 : i32
    %11 = arith.cmpi ne, %10, %c0_i32_9 : i32
    scf.if %11 {
      %c0_10 = arith.constant 0 : index
      %c0_11 = arith.constant 0 : index
      %12 = vector.load %arg5[%c0_10, %c0_11] : memref<16x32xf32, #tpu.memory_space<vmem>>, vector<16x32xf32>
      %13 = vector.extract_strided_slice %12 {offsets = [0, 0], sizes = [16, 8], strides = [1, 1]} : vector<16x32xf32> to vector<16x8xf32>
      %c0_12 = arith.constant 0 : index
      %c0_13 = arith.constant 0 : index
      %c0_14 = arith.constant 0 : index
      %14 = vector.load %arg4[%c0_12, %c0_13, %c0_14] : memref<4x16x8xf32, #tpu.memory_space<vmem>>, vector<1x16x8xf32>
      %15 = vector.shape_cast %14 : vector<1x16x8xf32> to vector<16x8xf32>
      %16 = vector.shape_cast %13 : vector<16x8xf32> to vector<1x16x8xf32>
      tpu.vector_store %arg4[%c0_12, %c0_13, %c0_14], %16 {strides = array<i32>} : memref<4x16x8xf32, #tpu.memory_space<vmem>>, vector<1x16x8xf32>,
      %17 = vector.extract_strided_slice %12 {offsets = [0, 8], sizes = [16, 8], strides = [1, 1]} : vector<16x32xf32> to vector<16x8xf32>
      %c1 = arith.constant 1 : index
      %c0_15 = arith.constant 0 : index
      %c0_16 = arith.constant 0 : index
      %18 = vector.load %arg4[%c1, %c0_15, %c0_16] : memref<4x16x8xf32, #tpu.memory_space<vmem>>, vector<1x16x8xf32>
      %19 = vector.shape_cast %18 : vector<1x16x8xf32> to vector<16x8xf32>
      %20 = vector.shape_cast %17 : vector<16x8xf32> to vector<1x16x8xf32>
      tpu.vector_store %arg4[%c1, %c0_15, %c0_16], %20 {strides = array<i32>} : memref<4x16x8xf32, #tpu.memory_space<vmem>>, vector<1x16x8xf32>,
      %21 = vector.extract_strided_slice %12 {offsets = [0, 16], sizes = [16, 8], strides = [1, 1]} : vector<16x32xf32> to vector<16x8xf32>
      %c2 = arith.constant 2 : index
      %c0_17 = arith.constant 0 : index
      %c0_18 = arith.constant 0 : index
      %22 = vector.load %arg4[%c2, %c0_17, %c0_18] : memref<4x16x8xf32, #tpu.memory_space<vmem>>, vector<1x16x8xf32>
      %23 = vector.shape_cast %22 : vector<1x16x8xf32> to vector<16x8xf32>
      %24 = vector.shape_cast %21 : vector<16x8xf32> to vector<1x16x8xf32>
      tpu.vector_store %arg4[%c2, %c0_17, %c0_18], %24 {strides = array<i32>} : memref<4x16x8xf32, #tpu.memory_space<vmem>>, vector<1x16x8xf32>,
      %25 = vector.extract_strided_slice %12 {offsets = [0, 24], sizes = [16, 8], strides = [1, 1]} : vector<16x32xf32> to vector<16x8xf32>
      %c3 = arith.constant 3 : index
      %c0_19 = arith.constant 0 : index
      %c0_20 = arith.constant 0 : index
      %26 = vector.load %arg4[%c3, %c0_19, %c0_20] : memref<4x16x8xf32, #tpu.memory_space<vmem>>, vector<1x16x8xf32>
      %27 = vector.shape_cast %26 : vector<1x16x8xf32> to vector<16x8xf32>
      %28 = vector.shape_cast %25 : vector<16x8xf32> to vector<1x16x8xf32>
      tpu.vector_store %arg4[%c3, %c0_19, %c0_20], %28 {strides = array<i32>} : memref<4x16x8xf32, #tpu.memory_space<vmem>>, vector<1x16x8xf32>,
    } else {
    }
    return
  }
  func.func @transform_0(%arg0: i32, %arg1: i32) -> (i32, i32) {
    %c0_i32 = arith.constant 0 : i32
    return %arg0, %arg1 : i32, i32
  }
  func.func @transform_1(%arg0: i32, %arg1: i32) -> (i32, i32) {
    %c0_i32 = arith.constant 0 : i32
    %c0_i32_0 = arith.constant 0 : i32
    return %arg1, %c0_i32 : i32, i32
  }
  func.func @transform_2(%arg0: i32, %arg1: i32) -> (i32, i32, i32) {
    %c0_i32 = arith.constant 0 : i32
    %c0_i32_0 = arith.constant 0 : i32
    %c0_i32_1 = arith.constant 0 : i32
    return %c0_i32, %arg0, %c0_i32_0 : i32, i32, i32
  }
}

</mosaic_0001>

<llo_original>
// kernel: tpu_custom_call.1
$region0: #{tpu_custom_call.1}
  #allocation0 [shape = 'u32[]', space=smem, size = 0x4, offset = 0x4, fixed_abs, tag = 'smem constant byte address 0x4 - core index']
  #allocation1 [shape = 'u32[72,128]{1,0:T(1,128)}', space=vmem, size = 0x9000, scoped, tag = 'internal scratch']
  #allocation2 [shape = 'f32[16,32]{1,0:T(8,128)}', space=vmem, size = 0x2000, scoped, tag = 'scratch operand']
  %s0 = inlined_call_operand.hbm [shape: f32[16,32], index: 0, kind: input, shape index: {}]
  %s1 = inlined_call_operand.hbm [shape: f32[32,32], index: 1, kind: input, shape index: {}]
  %s2 = inlined_call_operand.vmem [shape: f32[4,16,8], index: 2, kind: output, shape index: {}]
  %s3 = sld [smem:[#allocation0]]
  $region34: #{tpu_custom_call.1} parent=0
    _
  %s5 = ssub.s32 1, %s3
  %s6 = scalar_select 0, %s5, %s3
  $region1: #{tpu_custom_call.1} parent=0
    #allocation3 [shape = 'u8[8192]{0}', space=vmem, size = 0x2000, scoped, tag = 'input window, operand 0, single buffered']
    #allocation4 [shape = 's32[1]{0}', space=sflag, size = 0x4, scoped, tag = 'scoped memory for tpu_custom_call.1']
    #allocation5 [shape = 'u8[16384]{0}', space=vmem, size = 0x4000, scoped, tag = 'input window, operand 1, single buffered']
    #allocation6 [shape = 's32[1]{0}', space=sflag, size = 0x4, scoped, tag = 'scoped memory for tpu_custom_call.1']
    %7 = vsyncpa [#allocation4], 0
    %8 = vsyncpa [#allocation6], 0
    // Predicated region
    $region2: #{tpu_custom_call.1} parent=1 // pred_check
      _
    $region3: #{tpu_custom_call.1} parent=1 // pred_check_branch
      %10 = sbr.rel (0) target = $region5
    $region4: #{tpu_custom_call.1} parent=1 // pred_region
      %12 = vsyncadd [#allocation4], 0
      %s13 = sshll.u32 %s0, 4
      %s14 = int_to_ptr.hbm [resolvable:$true] %s13
      %s15 = sshll.u32 [#allocation3], 4
      %s16 = int_to_ptr.vmem [resolvable:$true] %s15
      %21 = dma.hbm_to_vmem [thread:$0]  %s14, 256, %s16, [#allocation4], 128, 128, 8
    $region5: #{tpu_custom_call.1} parent=1 // pred_fallthru
      _
    // Predicated region
    $region6: #{tpu_custom_call.1} parent=1 // pred_check
      _
    $region7: #{tpu_custom_call.1} parent=1 // pred_check_branch
      %23 = sbr.rel (0) target = $region9
    $region8: #{tpu_custom_call.1} parent=1 // pred_region
      %25 = vsyncadd [#allocation6], 0
      %s26 = sshll.u32 %s1, 4
      %s27 = int_to_ptr.hbm [resolvable:$true] %s26
      %s28 = sshll.u32 [#allocation5], 4
      %s29 = int_to_ptr.vmem [resolvable:$true] %s28
      %34 = dma.hbm_to_vmem [thread:$0]  %s27, 512, %s29, [#allocation6], 128, 128, 8
    $region9: #{tpu_custom_call.1} parent=1 // pred_fallthru
      _
    // Predicated region
    $region10: #{tpu_custom_call.1} parent=1 // pred_check
      _
    $region11: #{tpu_custom_call.1} parent=1 // pred_check_branch
      %36 = sbr.rel (0) target = $region13
    $region12: #{tpu_custom_call.1} parent=1 // pred_region
      %38 = dma.done [#allocation4], 256
    $region13: #{tpu_custom_call.1} parent=1 // pred_fallthru
      _
    // Predicated region
    $region14: #{tpu_custom_call.1} parent=1 // pred_check
      _
    $region15: #{tpu_custom_call.1} parent=1 // pred_check_branch
      %40 = sbr.rel (0) target = $region17
    $region16: #{tpu_custom_call.1} parent=1 // pred_region
      %42 = dma.done [#allocation6], 512
    $region17: #{tpu_custom_call.1} parent=1 // pred_fallthru
      _
    %p43 = scmp.eq.s32.totalorder 0, 0
    // Predicated region
    $region18: #{tpu_custom_call.1} parent=1 // pred_check
      %p44 = pneg %p43
    $region19: #{tpu_custom_call.1} parent=1 // pred_check_branch
      %46 = sbr.rel (%p44) target = $region21
    $region20: #{tpu_custom_call.1} parent=1 // pred_region
      %vm47 = vcmask 261120
      %48 = vst.msk [vmem:[#allocation2] sm:$0xff] %vm47, 0.0
      %49 = vst.msk [vmem:[#allocation2 + $0x8] sm:$0xff] %vm47, 0.0
    $region21: #{tpu_custom_call.1} parent=1 // pred_fallthru
      _
    %v50 = vld [vmem:[#allocation2] sm:$0xff]
    %v51 = vld [vmem:[#allocation2 + $0x8] sm:$0xff]
    %v52 = vld [vmem:[#allocation3] sm:$0xff]
    %v53 = vld [vmem:[#allocation3 + $0x8] sm:$0xff]
    %v54 = vld [vmem:[#allocation5] sm:$0xff]
    %v55 = vld [vmem:[#allocation5 + $0x8] sm:$0xff]
    %v56 = vld [vmem:[#allocation5 + $0x10] sm:$0xff]
    %v57 = vld [vmem:[#allocation5 + $0x18] sm:$0xff]
    %vm58 = vcmask 261120
    %v60 = vsel %vm58, %v52, 0
    %v63 = vsel %vm58, %v53, 0
    %65 = vmatpush.msra.mxu0 0.0
    %66 = vmatpush.msra.mxu0 0.0
    %67 = vmatpush.msra.mxu0 0.0
    %68 = vmatpush.msra.mxu0 0.0
    %69 = vmatpush.msra.mxu0 0.0
    %70 = vmatpush.msra.mxu0 0.0
    %71 = vmatpush.msra.mxu0 0.0
    %72 = vmatpush.msra.mxu0 0.0
    %73 = vmatpush.msra.mxu0 0.0
    %74 = vmatpush.msra.mxu0 0.0
    %75 = vmatpush.msra.mxu0 0.0
    %76 = vmatpush.msra.mxu0 0.0
    %77 = vmatpush.msra.mxu0 %v57
    %78 = vmatpush.msra.mxu0 %v56
    %79 = vmatpush.msra.mxu0 %v55
    %80 = vmatpush.msra.mxu0 %v54
    %81 = vmatmul.f32.gmra.mxu0 %v60
    %v82 = vpop.f32.mrf.mxu0
    %v83 = vadd.f32 0.0, %v82
    %84 = vmatmul.f32.gmra.mxu0 %v63
    %v85 = vpop.f32.mrf.mxu0
    %v86 = vadd.f32 0.0, %v85
    %87 = vdwg.mxu0
    %v88 = vadd.f32 %v50, %v83
    %v89 = vadd.f32 %v51, %v86
    %90 = vst.msk [vmem:[#allocation2] sm:$0xff] %vm58, %v88
    %91 = vst.msk [vmem:[#allocation2 + $0x8] sm:$0xff] %vm58, %v89
    // Predicated region
    $region22: #{tpu_custom_call.1} parent=1 // pred_check
      %p92 = pneg %p43
    $region23: #{tpu_custom_call.1} parent=1 // pred_check_branch
      %94 = sbr.rel (%p92) target = $region25
    $region24: #{tpu_custom_call.1} parent=1 // pred_region
      %v95 = vld [vmem:[#allocation2] sm:$0xff]
      %v96 = vld [vmem:[#allocation2 + $0x8] sm:$0xff]
      %vm97 = vcmask 64512
      %98 = vst.msk [vmem:[%s2] sm:$0xff] %vm97, %v95
      %99 = vst.msk [vmem:[%s2 + $0x8] sm:$0xff] %vm97, %v96
      %102 = vrot.lane.b32.xlu0 %v95, 120
      %v103 = vpop.permute.xlu0 %102
      %104 = vrot.lane.b32.xlu0 %v96, 120
      %v105 = vpop.permute.xlu0 %104
      %s108 = scalar_lea.vmem %s2, 16
      %109 = vst.msk [vmem:[%s108] sm:$0xff] %vm97, %v103
      %110 = vst.msk [vmem:[%s108 + $0x8] sm:$0xff] %vm97, %v105
      %111 = vrot.lane.b32.xlu0 %v95, 112
      %v112 = vpop.permute.xlu0 %111
      %113 = vrot.lane.b32.xlu0 %v96, 112
      %v114 = vpop.permute.xlu0 %113
      %s117 = scalar_lea.vmem %s2, 32
      %118 = vst.msk [vmem:[%s117] sm:$0xff] %vm97, %v112
      %119 = vst.msk [vmem:[%s117 + $0x8] sm:$0xff] %vm97, %v114
      %120 = vrot.lane.b32.xlu0 %v95, 104
      %v121 = vpop.permute.xlu0 %120
      %122 = vrot.lane.b32.xlu0 %v96, 104
      %v123 = vpop.permute.xlu0 %122
      %s126 = scalar_lea.vmem %s2, 48
      %127 = vst.msk [vmem:[%s126] sm:$0xff] %vm97, %v121
      %128 = vst.msk [vmem:[%s126 + $0x8] sm:$0xff] %vm97, %v123
    $region25: #{tpu_custom_call.1} parent=1 // pred_fallthru
      _
    // Predicated region
    $region26: #{tpu_custom_call.1} parent=1 // pred_check
      _
    $region27: #{tpu_custom_call.1} parent=1 // pred_check_branch
      %130 = sbr.rel (0) target = $region29
    $region28: #{tpu_custom_call.1} parent=1 // pred_region
      _
    $region29: #{tpu_custom_call.1} parent=1 // pred_fallthru
      _
    // Predicated region
    $region30: #{tpu_custom_call.1} parent=1 // pred_check
      _
    $region31: #{tpu_custom_call.1} parent=1 // pred_check_branch
      %132 = sbr.rel (0) target = $region33
    $region32: #{tpu_custom_call.1} parent=1 // pred_region
      _
    $region33: #{tpu_custom_call.1} parent=1 // pred_fallthru
      _
    %133 = vsyncpa [#allocation4], 1
    %134 = vsyncpa [#allocation6], 1

</llo_original>
